<compile_context>
chip_gen: v5e
topology: v5e:2x2
jax: 0.10.0
libtpu: 0.0.40
codegen_flags: <defaults>
</compile_context>

<pallas_src>
import functools

import jax
import jax.numpy as jnp
from jax.experimental import pallas as pl
from jax.experimental.pallas import tpu as pltpu

_INV_SQRT2 = 0.7071067811865476


def _round_up(x, m):
    return ((x + m - 1) // m) * m


def _pick_chunk(total, want):
    """Largest multiple of 128 that divides `total` (a multiple of 128) and is <= want."""
    want = max(128, min(want, total))
    for cand in range(want - want % 128, 0, -128):
        if total % cand == 0:
            return cand
    return total


# ---------------------------------------------------------------------------
# Generation-aware hardware parameters (queried once; safe fallbacks).
# ---------------------------------------------------------------------------
def _query_vmem_capacity_bytes():
    try:
        info = pltpu.get_tpu_info()
        for name in ("vmem_capacity_bytes", "vmem_bytes", "vmem_size_bytes"):
            v = getattr(info, name, None)
            if isinstance(v, int) and v > 0:
                return v
    except Exception:
        pass
    return 64 * 1024 * 1024  # conservative (v7x-sized) fallback


def _query_num_tensorcores():
    try:
        kind = jax.devices()[0].device_kind.lower()
    except Exception:
        return 1
    return 2 if any(t in kind for t in ("v7", "v5p", "v4")) else 1


_VMEM_CAP = _query_vmem_capacity_bytes()
_TILE_BUDGET = int(_VMEM_CAP * 0.70)   # budget for the tile set (headroom for compiler scratch)
_VMEM_LIMIT = int(_VMEM_CAP * 0.85)    # scoped limit handed to Mosaic
_NUM_TC = _query_num_tensorcores()


def _gelu_exact(x):
    # nn.GELU() default is the exact (erf) formulation; computed in fp32.
    # (Kept fp32 on all generations; v5e has no bf16 VPU and semantics must match.)
    return 0.5 * x * (1.0 + jax.lax.erf(x * _INV_SQRT2))


# ---------------------------------------------------------------------------
# Kernels
# ---------------------------------------------------------------------------
def _ffn_kernel_resident(x_ref, w1_ref, b1_ref, w2_ref, b2_ref, o_ref):
    """Weight-resident path: grid = (token_tiles,), weights DMA'd once (constant index)."""
    x = x_ref[...].astype(w1_ref.dtype)
    h = jnp.dot(x, w1_ref[...], preferred_element_type=jnp.float32)
    h = _gelu_exact(h + b1_ref[...])                      # b1 is fp32
    y = jnp.dot(h.astype(w2_ref.dtype), w2_ref[...],
                preferred_element_type=jnp.float32)
    o_ref[...] = (y + b2_ref[...]).astype(o_ref.dtype)    # b2 is fp32


def _ffn_kernel_chunked(x_ref, w1_ref, b1_ref, w2_ref, b2_ref, o_ref, acc_ref):
    """Hidden-chunked path: grid = (token_tiles, hidden_chunks); fp32 accumulator."""
    k = pl.program_id(1)

    @pl.when(k == 0)
    def _init():
        acc_ref[...] = jnp.zeros_like(acc_ref)

    x = x_ref[...].astype(w1_ref.dtype)
    h = jnp.dot(x, w1_ref[...], preferred_element_type=jnp.float32)
    h = _gelu_exact(h + b1_ref[...])
    acc_ref[...] += jnp.dot(h.astype(w2_ref.dtype), w2_ref[...],
                            preferred_element_type=jnp.float32)

    @pl.when(k == pl.num_programs(1) - 1)
    def _finalize():
        o_ref[...] = (acc_ref[...] + b2_ref[...]).astype(o_ref.dtype)


# ---------------------------------------------------------------------------
# Tile selection
# ---------------------------------------------------------------------------
def _footprint(tm, th, resident, dim_p, out_p, x_item, w_item, out_item):
    b = 2 * tm * dim_p * x_item        # x tile (double-buffered)
    b += tm * dim_p * w_item           # in-kernel cast copy of the x tile
    b += 2 * dim_p * th * w_item       # w1 block (conservatively counted double-buffered)
    b += 2 * th * out_p * w_item       # w2 block
    b += 2 * (th + out_p) * 4          # fp32 bias rows
    b += 2 * tm * out_p * out_item     # output tile
    b += tm * th * (4 + w_item)        # fp32 GELU intermediate + cast copy for fc2
    if not resident:
        b += tm * out_p * 4            # fp32 accumulator scratch
    return b


def _auto_tiles(T8, dim_p, hid_p, out_p, x_item, w_item, out_item, budget, num_tc):
    want_tm = min(1024, T8)
    # Keep >= 2 token tiles on multi-TensorCore chips so the "parallel" axis shards.
    if num_tc >= 2 and T8 >= 16:
        want_tm = min(want_tm, _round_up((T8 + 1) // 2, 8))
    want_tm = max(8, want_tm)

    def fits(tm, th, resident):
        return _footprint(tm, th, resident, dim_p, out_p,
                          x_item, w_item, out_item) <= budget

    # 1) Weight-resident: both weight matrices live in VMEM for the whole grid
    #    (constant index_maps -> DMA'd exactly once); no accumulator needed.
    tm = want_tm
    while tm > 128 and not fits(tm, hid_p, True):
        tm = max(128, _round_up(tm // 2, 8))
    if fits(tm, hid_p, True):
        return tm, hid_p

    # 2) Hidden-chunked fallback: keep the token tile as large as possible and
    #    stream the largest hidden chunk that fits (fewer k steps = fewer
    #    accumulator RMWs and less weight re-streaming).
    tm = want_tm
    while True:
        for cand in range(hid_p, 0, -128):
            if hid_p % cand == 0 and fits(tm, cand, False):
                return tm, cand
        if tm <= 8:
            return 8, 128
        tm = max(8, _round_up(tm // 2, 8))


# ---------------------------------------------------------------------------
# Parameter preparation (done ONCE at model setup: pad + cast weights, fp32 biases)
# ---------------------------------------------------------------------------
def prepare_ffn_params(w1_t, b1, w2_t, b2, compute_dtype=jnp.bfloat16):
    """w1_t: (dim, hidden), w2_t: (hidden, out_dim).  Returns padded/cast params."""
    dim, hidden = w1_t.shape
    hidden2, out_dim = w2_t.shape
    assert hidden == hidden2
    cdt = jnp.dtype(compute_dtype)
    dim_p = _round_up(dim, 128)
    hid_p = _round_up(hidden, 128)
    out_p = _round_up(out_dim, 128)
    # Zero padding is mathematically neutral (zero rows/cols contribute nothing,
    # and GELU(0 + 0) = 0 keeps padded hidden columns exactly zero).
    w1p = jnp.pad(w1_t.astype(cdt), ((0, dim_p - dim), (0, hid_p - hidden)))
    w2p = jnp.pad(w2_t.astype(cdt), ((0, hid_p - hidden), (0, out_p - out_dim)))
    b1p = jnp.pad(b1.astype(jnp.float32).reshape(1, hidden), ((0, 0), (0, hid_p - hidden)))
    b2p = jnp.pad(b2.astype(jnp.float32).reshape(1, out_dim), ((0, 0), (0, out_p - out_dim)))
    return {"w1": w1p, "b1": b1p, "w2": w2p, "b2": b2p, "out_dim": out_dim}


# ---------------------------------------------------------------------------
# Forward
# ---------------------------------------------------------------------------
@functools.partial(jax.jit, static_argnames=("out_dim", "block_tokens", "block_hidden"))
def _feed_forward_impl(x, w1p, b1p, w2p, b2p, *, out_dim,
                       block_tokens=None, block_hidden=None):
    B, N, dim = x.shape
    dim_p, hid_p = w1p.shape
    out_p = w2p.shape[1]
    out_dtype = x.dtype
    cdt = jnp.dtype(w1p.dtype)

    T = B * N
    T8 = _round_up(T, 8)
    x_item = jnp.dtype(x.dtype).itemsize
    w_item = cdt.itemsize
    out_item = jnp.dtype(out_dtype).itemsize

    tm_auto, th_auto = _auto_tiles(T8, dim_p, hid_p, out_p,
                                   x_item, w_item, out_item, _TILE_BUDGET, _NUM_TC)
    tm = min(_round_up(block_tokens, 8), T8) if block_tokens else tm_auto
    th = _pick_chunk(hid_p, _round_up(block_hidden, 128)) if block_hidden else th_auto

    T_p = _round_up(T, tm)
    n_i = T_p // tm
    n_k = hid_p // th
    resident = (n_k == 1)

    # Pad tokens / feature dim only when actually needed (no per-call cast of x:
    # the cast to the compute dtype happens on the tile inside the kernel).
    x2 = x.reshape(T, dim)
    if (T_p, dim_p) != (T, dim):
        x2 = jnp.pad(x2, ((0, T_p - T), (0, dim_p - dim)))

    w_reads = 1 if resident else n_i
    cost = pl.CostEstimate(
        flops=2 * T_p * dim_p * hid_p + 2 * T_p * hid_p * out_p,
        transcendentals=T_p * hid_p,
        bytes_accessed=(T_p * dim_p * x_item
                        + T_p * out_p * out_item
                        + w_reads * (dim_p * hid_p + hid_p * out_p) * w_item
                        + (hid_p + out_p) * 4),
    )

    fp = _footprint(tm, th, resident, dim_p, out_p, x_item, w_item, out_item)
    vmem_limit = int(min(_VMEM_CAP, max(_VMEM_LIMIT, fp + (8 << 20))))

    if resident:
        grid_spec = pltpu.PrefetchScalarGridSpec(
            num_scalar_prefetch=0,
            grid=(n_i,),
            in_specs=[
                pl.BlockSpec((tm, dim_p), lambda i: (i, 0)),      # x token tile
                pl.BlockSpec((dim_p, hid_p), lambda i: (0, 0)),   # w1 (resident, DMA'd once)
                pl.BlockSpec((1, hid_p), lambda i: (0, 0)),       # b1 (fp32)
                pl.BlockSpec((hid_p, out_p), lambda i: (0, 0)),   # w2 (resident, DMA'd once)
                pl.BlockSpec((1, out_p), lambda i: (0, 0)),       # b2 (fp32)
            ],
            out_specs=pl.BlockSpec((tm, out_p), lambda i: (i, 0)),
        )
        kernel = _ffn_kernel_resident
        semantics = ("parallel",)
    else:
        grid_spec = pltpu.PrefetchScalarGridSpec(
            num_scalar_prefetch=0,
            grid=(n_i, n_k),
            in_specs=[
                pl.BlockSpec((tm, dim_p), lambda i, k: (i, 0)),   # x tile (const in k)
                pl.BlockSpec((dim_p, th), lambda i, k: (0, k)),   # w1 hidden chunk
                pl.BlockSpec((1, th), lambda i, k: (0, k)),       # b1 hidden chunk
                pl.BlockSpec((th, out_p), lambda i, k: (k, 0)),   # w2 hidden chunk
                pl.BlockSpec((1, out_p), lambda i, k: (0, 0)),    # b2
            ],
            out_specs=pl.BlockSpec((tm, out_p), lambda i, k: (i, 0)),
            scratch_shapes=[pltpu.VMEM((tm, out_p), jnp.float32)],
        )
        kernel = _ffn_kernel_chunked
        semantics = ("parallel", "arbitrary")

    out2 = pl.pallas_call(
        kernel,
        out_shape=jax.ShapeDtypeStruct((T_p, out_p), out_dtype),
        grid_spec=grid_spec,
        compiler_params=pltpu.CompilerParams(
            dimension_semantics=semantics,
            vmem_limit_bytes=vmem_limit,
        ),
        cost_estimate=cost,
    )(x2, w1p, b1p, w2p, b2p)

    return out2[:T, :out_dim].reshape(B, N, out_dim)


def feed_forward(x, params, *, block_tokens=None, block_hidden=None):
    """x: (B, N, dim); params: output of prepare_ffn_params()."""
    return _feed_forward_impl(x, params["w1"], params["b1"], params["w2"], params["b2"],
                              out_dim=params["out_dim"],
                              block_tokens=block_tokens, block_hidden=block_hidden)


def _reference(x, w1_t, b1, w2_t, b2):
    hp = jax.lax.Precision.HIGHEST
    h = jnp.einsum("bnd,dh->bnh", x, w1_t, precision=hp) + b1
    h = jax.nn.gelu(h, approximate=False)
    return jnp.einsum("bnh,ho->bno", h, w2_t, precision=hp) + b2


if __name__ == "__main__":
    key = jax.random.PRNGKey(0)

    # --- Small shapes consistent with a transformer MLP block (eval mode). ---
    B, N, dim, hidden = 2, 8, 32, 64
    out_dim = dim  # out_dim=None in the module -> out_dim = dim
    kx, kw1, kb1, kw2, kb2, k_rest = jax.random.split(key, 6)

    x = jax.random.normal(kx, (B, N, dim), dtype=jnp.float32)
    w1_t = jax.random.normal(kw1, (dim, hidden), dtype=jnp.float32) * 0.02
    b1 = jax.random.normal(kb1, (hidden,), dtype=jnp.float32) * 0.02
    w2_t = jax.random.normal(kw2, (hidden, out_dim), dtype=jnp.float32) * 0.02
    b2 = jax.random.normal(kb2, (out_dim,), dtype=jnp.float32) * 0.02

    # fp32 operands, auto (weight-resident) tiling: tight numeric check.
    params_f32 = prepare_ffn_params(w1_t, b1, w2_t, b2, compute_dtype=jnp.float32)
    out = jax.block_until_ready(feed_forward(x, params_f32))
    ref = _reference(x, w1_t, b1, w2_t, b2)
    assert out.shape == (B, N, out_dim)
    assert jnp.allclose(out, ref, atol=1e-5, rtol=1e-5), "fp32 resident-path mismatch"

    # --- Multi-tile check: exercises token tiling, the hidden-reduction
    #     accumulator path, and the fp32 finalize. ---
    B2, N2, dim2, hid2 = 2, 256, 128, 512
    ka, kb, kc, kd, ke = jax.random.split(k_rest, 5)
    x_l = jax.random.normal(ka, (B2, N2, dim2), dtype=jnp.float32)
    w1_l = jax.random.normal(kb, (dim2, hid2), dtype=jnp.float32) * 0.02
    b1_l = jax.random.normal(kc, (hid2,), dtype=jnp.float32) * 0.02
    w2_l = jax.random.normal(kd, (hid2, dim2), dtype=jnp.float32) * 0.02
    b2_l = jax.random.normal(ke, (dim2,), dtype=jnp.float32) * 0.02

    params_l_f32 = prepare_ffn_params(w1_l, b1_l, w2_l, b2_l, compute_dtype=jnp.float32)
    out_l = jax.block_until_ready(
        feed_forward(x_l, params_l_f32, block_tokens=128, block_hidden=256))  # grid = (4, 2)
    ref_l = _reference(x_l, w1_l, b1_l, w2_l, b2_l)
    assert jnp.allclose(out_l, ref_l, atol=1e-4, rtol=1e-4), "fp32 chunked-path mismatch"

    # --- Default config: bf16 MXU operands (fp32 accumulation / biases / GELU),
    #     auto weight-resident tiling. ---
    params_l_bf16 = prepare_ffn_params(w1_l, b1_l, w2_l, b2_l)  # bf16 default
    out_bf = jax.block_until_ready(feed_forward(x_l, params_l_bf16))
    assert jnp.allclose(out_bf, ref_l, atol=3e-2, rtol=3e-2), "bf16 resident-path mismatch"

    print("KERNEL_OK")
</pallas_src>

<mosaic_0001>
module attributes {stable_mosaic.version = 11 : i64} {
  func.func @_ffn_kernel_resident(%arg0: i32, %arg1: memref<16x128xf32, #tpu.memory_space<vmem>>, %arg2: memref<128x128xf32, #tpu.memory_space<vmem>>, %arg3: memref<1x128xf32, #tpu.memory_space<vmem>>, %arg4: memref<128x128xf32, #tpu.memory_space<vmem>>, %arg5: memref<1x128xf32, #tpu.memory_space<vmem>>, %arg6: memref<16x128xf32, #tpu.memory_space<vmem>>) attributes {dimension_semantics = [#tpu.dimension_semantics<parallel>], iteration_bounds = array<i64: 1>, scalar_prefetch = 0 : i64, scratch_operands = 0 : i64, tpu.core_type = #tpu.core_type<tc>, window_params = [{transform_indices = @transform_0, window_bounds = array<i64: 16, 128>}, {pipeline_mode = #tpu.pipeline_mode<synchronous>, transform_indices = @transform_1, window_bounds = array<i64: 128, 128>}, {pipeline_mode = #tpu.pipeline_mode<synchronous>, transform_indices = @transform_2, window_bounds = array<i64: 1, 128>}, {pipeline_mode = #tpu.pipeline_mode<synchronous>, transform_indices = @transform_3, window_bounds = array<i64: 128, 128>}, {pipeline_mode = #tpu.pipeline_mode<synchronous>, transform_indices = @transform_4, window_bounds = array<i64: 1, 128>}, {transform_indices = @transform_5, window_bounds = array<i64: 16, 128>}]} {
    %c0 = arith.constant 0 : index
    %c0_0 = arith.constant 0 : index
    %0 = vector.load %arg1[%c0, %c0_0] : memref<16x128xf32, #tpu.memory_space<vmem>>, vector<16x128xf32>
    %c0_1 = arith.constant 0 : index
    %c0_2 = arith.constant 0 : index
    %1 = vector.load %arg2[%c0_1, %c0_2] : memref<128x128xf32, #tpu.memory_space<vmem>>, vector<128x128xf32>
    %cst = arith.constant dense<0.000000e+00> : vector<16x128xf32>
    %2 = tpu.matmul %0, %1, %cst {dimension_numbers = #tpu.dot_dimension_numbers<[1], [0], [0], [1], [0, 0, 1, 1], [], []>} : vector<16x128xf32>, vector<128x128xf32>, vector<16x128xf32> -> vector<16x128xf32>
    %c0_3 = arith.constant 0 : index
    %c0_4 = arith.constant 0 : index
    %3 = vector.load %arg3[%c0_3, %c0_4] : memref<1x128xf32, #tpu.memory_space<vmem>>, vector<1x128xf32>
    %4 = vector.broadcast %3 : vector<1x128xf32> to vector<16x128xf32>
    %5 = arith.addf %2, %4 : vector<16x128xf32>
    %cst_5 = arith.constant 5.000000e-01 : f32
    %6 = vector.broadcast %cst_5 : f32 to vector<16x128xf32>
    %7 = arith.mulf %6, %5 : vector<16x128xf32>
    %cst_6 = arith.constant 0.707106769 : f32
    %8 = vector.broadcast %cst_6 : f32 to vector<16x128xf32>
    %9 = arith.mulf %5, %8 : vector<16x128xf32>
    %10 = math.erf %9 : vector<16x128xf32>
    %cst_7 = arith.constant 1.000000e+00 : f32
    %11 = vector.broadcast %cst_7 : f32 to vector<16x128xf32>
    %12 = arith.addf %11, %10 : vector<16x128xf32>
    %13 = arith.mulf %7, %12 : vector<16x128xf32>
    %c0_8 = arith.constant 0 : index
    %c0_9 = arith.constant 0 : index
    %14 = vector.load %arg4[%c0_8, %c0_9] : memref<128x128xf32, #tpu.memory_space<vmem>>, vector<128x128xf32>
    %cst_10 = arith.constant dense<0.000000e+00> : vector<16x128xf32>
    %15 = tpu.matmul %13, %14, %cst_10 {dimension_numbers = #tpu.dot_dimension_numbers<[1], [0], [0], [1], [0, 0, 1, 1], [], []>} : vector<16x128xf32>, vector<128x128xf32>, vector<16x128xf32> -> vector<16x128xf32>
    %c0_11 = arith.constant 0 : index
    %c0_12 = arith.constant 0 : index
    %16 = vector.load %arg5[%c0_11, %c0_12] : memref<1x128xf32, #tpu.memory_space<vmem>>, vector<1x128xf32>
    %17 = vector.broadcast %16 : vector<1x128xf32> to vector<16x128xf32>
    %18 = arith.addf %15, %17 : vector<16x128xf32>
    %c0_13 = arith.constant 0 : index
    %c0_14 = arith.constant 0 : index
    %19 = vector.load %arg6[%c0_13, %c0_14] : memref<16x128xf32, #tpu.memory_space<vmem>>, vector<16x128xf32>
    tpu.vector_store %arg6[%c0_13, %c0_14], %18 {strides = array<i32>} : memref<16x128xf32, #tpu.memory_space<vmem>>, vector<16x128xf32>,
    return
  }
  func.func @transform_0(%arg0: i32) -> (i32, i32) {
    %c0_i32 = arith.constant 0 : i32
    %c0_i32_0 = arith.constant 0 : i32
    return %arg0, %c0_i32 : i32, i32
  }
  func.func @transform_1(%arg0: i32) -> (i32, i32) {
    %c0_i32 = arith.constant 0 : i32
    %c0_i32_0 = arith.constant 0 : i32
    %c0_i32_1 = arith.constant 0 : i32
    return %c0_i32, %c0_i32_0 : i32, i32
  }
  func.func @transform_2(%arg0: i32) -> (i32, i32) {
    %c0_i32 = arith.constant 0 : i32
    %c0_i32_0 = arith.constant 0 : i32
    %c0_i32_1 = arith.constant 0 : i32
    return %c0_i32, %c0_i32_0 : i32, i32
  }
  func.func @transform_3(%arg0: i32) -> (i32, i32) {
    %c0_i32 = arith.constant 0 : i32
    %c0_i32_0 = arith.constant 0 : i32
    %c0_i32_1 = arith.constant 0 : i32
    return %c0_i32, %c0_i32_0 : i32, i32
  }
  func.func @transform_4(%arg0: i32) -> (i32, i32) {
    %c0_i32 = arith.constant 0 : i32
    %c0_i32_0 = arith.constant 0 : i32
    %c0_i32_1 = arith.constant 0 : i32
    return %c0_i32, %c0_i32_0 : i32, i32
  }
  func.func @transform_5(%arg0: i32) -> (i32, i32) {
    %c0_i32 = arith.constant 0 : i32
    %c0_i32_0 = arith.constant 0 : i32
    return %arg0, %c0_i32 : i32, i32
  }
}

</mosaic_0001>

<llo_original>
// kernel: _feed_forward_impl.1
$region0: #{_feed_forward_impl.1}
  #allocation0 [shape = 'u32[]', space=smem, size = 0x4, offset = 0x4, fixed_abs, tag = 'smem constant byte address 0x4 - core index']
  #allocation1 [shape = 'u32[72,128]{1,0:T(1,128)}', space=vmem, size = 0x9000, scoped, tag = 'internal scratch']
  %s0 = inlined_call_operand.vmem [shape: f32[16,128], index: 0, kind: input, shape index: {}]
  %s1 = inlined_call_operand.hbm [shape: f32[128,128], index: 1, kind: input, shape index: {}]
  %s2 = inlined_call_operand.vmem [shape: f32[1,128], index: 2, kind: input, shape index: {}]
  %s3 = inlined_call_operand.hbm [shape: f32[128,128], index: 3, kind: input, shape index: {}]
  %s4 = inlined_call_operand.vmem [shape: f32[1,128], index: 4, kind: input, shape index: {}]
  %s5 = inlined_call_operand.vmem [shape: f32[16,128], index: 5, kind: output, shape index: {}]
  %s6 = sld [smem:[#allocation0]]
  $region38: #{_feed_forward_impl.1} parent=0
    _
  %s8 = ssub.s32 1, %s6
  %s9 = scalar_select 0, %s8, %s6
  $region1: #{_feed_forward_impl.1} parent=0
    #allocation2 [shape = 'u8[65536]{0}', space=vmem, size = 0x10000, scoped, tag = 'input window, operand 1, single buffered']
    #allocation3 [shape = 's32[1]{0}', space=sflag, size = 0x4, scoped, tag = 'scoped memory for _feed_forward_impl.1']
    #allocation4 [shape = 'u8[65536]{0}', space=vmem, size = 0x10000, scoped, tag = 'input window, operand 3, single buffered']
    #allocation5 [shape = 's32[1]{0}', space=sflag, size = 0x4, scoped, tag = 'scoped memory for _feed_forward_impl.1']
    %10 = vsyncpa [#allocation3], 0
    %11 = vsyncpa [#allocation5], 0
    // Predicated region
    $region2: #{_feed_forward_impl.1} parent=1 // pred_check
      _
    $region3: #{_feed_forward_impl.1} parent=1 // pred_check_branch
      %13 = sbr.rel (0) target = $region5
    $region4: #{_feed_forward_impl.1} parent=1 // pred_region
      _
    $region5: #{_feed_forward_impl.1} parent=1 // pred_fallthru
      _
    // Predicated region
    $region6: #{_feed_forward_impl.1} parent=1 // pred_check
      _
    $region7: #{_feed_forward_impl.1} parent=1 // pred_check_branch
      %15 = sbr.rel (0) target = $region9
    $region8: #{_feed_forward_impl.1} parent=1 // pred_region
      %17 = vsyncadd [#allocation3], 0
      %s18 = sshll.u32 %s1, 4
      %s19 = int_to_ptr.hbm [resolvable:$true] %s18
      %s20 = sshll.u32 [#allocation2], 4
      %s21 = int_to_ptr.vmem [resolvable:$true] %s20
      %26 = dma.hbm_to_vmem [thread:$0]  %s19, 2048, %s21, [#allocation3], 128, 128, 8
    $region9: #{_feed_forward_impl.1} parent=1 // pred_fallthru
      _
    // Predicated region
    $region10: #{_feed_forward_impl.1} parent=1 // pred_check
      _
    $region11: #{_feed_forward_impl.1} parent=1 // pred_check_branch
      %28 = sbr.rel (0) target = $region13
    $region12: #{_feed_forward_impl.1} parent=1 // pred_region
      _
    $region13: #{_feed_forward_impl.1} parent=1 // pred_fallthru
      _
    // Predicated region
    $region14: #{_feed_forward_impl.1} parent=1 // pred_check
      _
    $region15: #{_feed_forward_impl.1} parent=1 // pred_check_branch
      %30 = sbr.rel (0) target = $region17
    $region16: #{_feed_forward_impl.1} parent=1 // pred_region
      %32 = vsyncadd [#allocation5], 0
      %s33 = sshll.u32 %s3, 4
      %s34 = int_to_ptr.hbm [resolvable:$true] %s33
      %s35 = sshll.u32 [#allocation4], 4
      %s36 = int_to_ptr.vmem [resolvable:$true] %s35
      %41 = dma.hbm_to_vmem [thread:$0]  %s34, 2048, %s36, [#allocation5], 128, 128, 8
    $region17: #{_feed_forward_impl.1} parent=1 // pred_fallthru
      _
    // Predicated region
    $region18: #{_feed_forward_impl.1} parent=1 // pred_check
      _
    $region19: #{_feed_forward_impl.1} parent=1 // pred_check_branch
      %43 = sbr.rel (0) target = $region21
    $region20: #{_feed_forward_impl.1} parent=1 // pred_region
      _
    $region21: #{_feed_forward_impl.1} parent=1 // pred_fallthru
      _
    // Predicated region
    $region22: #{_feed_forward_impl.1} parent=1 // pred_check
      _
    $region23: #{_feed_forward_impl.1} parent=1 // pred_check_branch
      %45 = sbr.rel (0) target = $region25
    $region24: #{_feed_forward_impl.1} parent=1 // pred_region
      %47 = dma.done [#allocation3], 2048
    $region25: #{_feed_forward_impl.1} parent=1 // pred_fallthru
      _
    // Predicated region
    $region26: #{_feed_forward_impl.1} parent=1 // pred_check
      _
    $region27: #{_feed_forward_impl.1} parent=1 // pred_check_branch
      %49 = sbr.rel (0) target = $region29
    $region28: #{_feed_forward_impl.1} parent=1 // pred_region
      %51 = dma.done [#allocation5], 2048
    $region29: #{_feed_forward_impl.1} parent=1 // pred_fallthru
      _
    %v52 = vld [vmem:[%s0] sm:$0xff]
    %v53 = vld [vmem:[%s0 + $0x8] sm:$0xff]
    %v54 = vld [vmem:[#allocation2] sm:$0xff]
    %v55 = vld [vmem:[#allocation2 + $0x8] sm:$0xff]
    %v56 = vld [vmem:[#allocation2 + $0x10] sm:$0xff]
    %v57 = vld [vmem:[#allocation2 + $0x18] sm:$0xff]
    %v58 = vld [vmem:[#allocation2 + $0x20] sm:$0xff]
    %v59 = vld [vmem:[#allocation2 + $0x28] sm:$0xff]
    %v60 = vld [vmem:[#allocation2 + $0x30] sm:$0xff]
    %v61 = vld [vmem:[#allocation2 + $0x38] sm:$0xff]
    %v62 = vld [vmem:[#allocation2 + $0x40] sm:$0xff]
    %v63 = vld [vmem:[#allocation2 + $0x48] sm:$0xff]
    %v64 = vld [vmem:[#allocation2 + $0x50] sm:$0xff]
    %v65 = vld [vmem:[#allocation2 + $0x58] sm:$0xff]
    %v66 = vld [vmem:[#allocation2 + $0x60] sm:$0xff]
    %v67 = vld [vmem:[#allocation2 + $0x68] sm:$0xff]
    %v68 = vld [vmem:[#allocation2 + $0x70] sm:$0xff]
    %v69 = vld [vmem:[#allocation2 + $0x78] sm:$0xff]
    %v70 = vld [vmem:[%s2] sm:$0x1]
    %v72 = vperm.slane %v70, 0
    %74 = vmatpush.msra.mxu0 %v69
    %75 = vmatpush.msra.mxu0 %v68
    %76 = vmatpush.msra.mxu0 %v67
    %77 = vmatpush.msra.mxu0 %v66
    %78 = vmatpush.msra.mxu0 %v65
    %79 = vmatpush.msra.mxu0 %v64
    %80 = vmatpush.msra.mxu0 %v63
    %81 = vmatpush.msra.mxu0 %v62
    %82 = vmatpush.msra.mxu0 %v61
    %83 = vmatpush.msra.mxu0 %v60
    %84 = vmatpush.msra.mxu0 %v59
    %85 = vmatpush.msra.mxu0 %v58
    %86 = vmatpush.msra.mxu0 %v57
    %87 = vmatpush.msra.mxu0 %v56
    %88 = vmatpush.msra.mxu0 %v55
    %89 = vmatpush.msra.mxu0 %v54
    %90 = vmatmul.f32.gmra.mxu0 %v52
    %v91 = vpop.f32.mrf.mxu0
    %v92 = vadd.f32 %v72, %v91
    %93 = vmatmul.f32.gmra.mxu0 %v53
    %v94 = vpop.f32.mrf.mxu0
    %v95 = vadd.f32 %v72, %v94
    %96 = vdwg.mxu0
    %v97 = vmul.f32 %v92, 0.5
    %v98 = vmul.f32 %v95, 0.5
    %v99 = vmul.f32 %v92, 0.70710677
    %v100 = vmul.f32 %v95, 0.70710677
    %v101 = vmul.f32 %v99, %v99
    %v102 = vmin.f32 16.0, %v101
    %v103 = vmul.f32 %v102, 2.1237322e-06
    %v104 = vadd.f32 %v103, 0.00028619796
    %v105 = vmul.f32 %v102, %v104
    %v106 = vadd.f32 %v105, 0.0036580483
    %v107 = vmul.f32 %v102, %v106
    %v108 = vadd.f32 %v107, 0.05243302
    %v109 = vmul.f32 %v102, %v108
    %v110 = vadd.f32 %v109, 0.18741608
    %v111 = vmul.f32 %v102, %v110
    %v112 = vadd.f32 %v111, 1.1283791
    %v113 = vmul.f32 %v99, %v112
    %v114 = vmul.f32 %v102, 3.8918573e-05
    %v115 = vadd.f32 %v114, 0.001143296
    %v116 = vmul.f32 %v102, %v115
    %v117 = vadd.f32 %v116, 0.014752088
    %v118 = vmul.f32 %v102, %v117
    %v119 = vadd.f32 %v118, 0.112945676
    %v120 = vmul.f32 %v102, %v119
    %v121 = vadd.f32 %v120, 0.4994258
    %v122 = vmul.f32 %v102, %v121
    %v123 = vadd.f32 %v122, 1.0
    %v124 = vrcp.pop %v123
    %v125 = vmul.f32 %v123, %v124
    %v126 = vsub.f32 1.0, %v125
    %v127 = vmul.f32 %v124, %v126
    %v128 = vadd.f32 %v124, %v127
    %vm129 = vweird.f32 %v123
    %vm130 = vweird.f32 %v124
    %vm131 = vmor %vm129, %vm130
    %v132 = vsel %vm131, %v124, %v128
    %v133 = vand.u32 2147483647, %v123
    %vm134 = vcmp.eq.f32.partialorder %v133, 8.507059e+37
    %v135 = vand.u32 %v123, 2147483648
    %v136 = vor.u32 1.1754944e-38, %v135
    %v137 = vsel %vm134, %v136, %v132
    %v138 = vmul.f32 %v113, %v137
    %v139 = vmin.f32 %v138, 1.0
    %v140 = vmax.f32 %v139, -1.0
    %v141 = vmul.f32 %v100, %v100
    %v142 = vmin.f32 16.0, %v141
    %v143 = vmul.f32 %v142, 2.1237322e-06
    %v144 = vadd.f32 %v143, 0.00028619796
    %v145 = vmul.f32 %v142, %v144
    %v146 = vadd.f32 %v145, 0.0036580483
    %v147 = vmul.f32 %v142, %v146
    %v148 = vadd.f32 %v147, 0.05243302
    %v149 = vmul.f32 %v142, %v148
    %v150 = vadd.f32 %v149, 0.18741608
    %v151 = vmul.f32 %v142, %v150
    %v152 = vadd.f32 %v151, 1.1283791
    %v153 = vmul.f32 %v100, %v152
    %v154 = vmul.f32 %v142, 3.8918573e-05
    %v155 = vadd.f32 %v154, 0.001143296
    %v156 = vmul.f32 %v142, %v155
    %v157 = vadd.f32 %v156, 0.014752088
    %v158 = vmul.f32 %v142, %v157
    %v159 = vadd.f32 %v158, 0.112945676
    %v160 = vmul.f32 %v142, %v159
    %v161 = vadd.f32 %v160, 0.4994258
    %v162 = vmul.f32 %v142, %v161
    %v163 = vadd.f32 %v162, 1.0
    %v164 = vrcp.pop %v163
    %v165 = vmul.f32 %v163, %v164
    %v166 = vsub.f32 1.0, %v165
    %v167 = vmul.f32 %v164, %v166
    %v168 = vadd.f32 %v164, %v167
    %vm169 = vweird.f32 %v163
    %vm170 = vweird.f32 %v164
    %vm171 = vmor %vm169, %vm170
    %v172 = vsel %vm171, %v164, %v168
    %v173 = vand.u32 2147483647, %v163
    %vm174 = vcmp.eq.f32.partialorder %v173, 8.507059e+37
    %v175 = vand.u32 %v163, 2147483648
    %v176 = vor.u32 1.1754944e-38, %v175
    %v177 = vsel %vm174, %v176, %v172
    %v178 = vmul.f32 %v153, %v177
    %v179 = vmin.f32 %v178, 1.0
    %v180 = vmax.f32 %v179, -1.0
    %v181 = vadd.f32 %v140, 1.0
    %v182 = vadd.f32 %v180, 1.0
    %v183 = vmul.f32 %v97, %v181
    %v184 = vmul.f32 %v98, %v182
    %v185 = vld [vmem:[#allocation4] sm:$0xff]
    %v186 = vld [vmem:[#allocation4 + $0x8] sm:$0xff]
    %v187 = vld [vmem:[#allocation4 + $0x10] sm:$0xff]
    %v188 = vld [vmem:[#allocation4 + $0x18] sm:$0xff]
    %v189 = vld [vmem:[#allocation4 + $0x20] sm:$0xff]
    %v190 = vld [vmem:[#allocation4 + $0x28] sm:$0xff]
    %v191 = vld [vmem:[#allocation4 + $0x30] sm:$0xff]
    %v192 = vld [vmem:[#allocation4 + $0x38] sm:$0xff]
    %v193 = vld [vmem:[#allocation4 + $0x40] sm:$0xff]
    %v194 = vld [vmem:[#allocation4 + $0x48] sm:$0xff]
    %v195 = vld [vmem:[#allocation4 + $0x50] sm:$0xff]
    %v196 = vld [vmem:[#allocation4 + $0x58] sm:$0xff]
    %v197 = vld [vmem:[#allocation4 + $0x60] sm:$0xff]
    %v198 = vld [vmem:[#allocation4 + $0x68] sm:$0xff]
    %v199 = vld [vmem:[#allocation4 + $0x70] sm:$0xff]
    %v200 = vld [vmem:[#allocation4 + $0x78] sm:$0xff]
    %v201 = vld [vmem:[%s4] sm:$0x1]
    %v203 = vperm.slane %v201, 0
    %205 = vmatpush.msra.mxu0 %v200
    %206 = vmatpush.msra.mxu0 %v199
    %207 = vmatpush.msra.mxu0 %v198
    %208 = vmatpush.msra.mxu0 %v197
    %209 = vmatpush.msra.mxu0 %v196
    %210 = vmatpush.msra.mxu0 %v195
    %211 = vmatpush.msra.mxu0 %v194
    %212 = vmatpush.msra.mxu0 %v193
    %213 = vmatpush.msra.mxu0 %v192
    %214 = vmatpush.msra.mxu0 %v191
    %215 = vmatpush.msra.mxu0 %v190
    %216 = vmatpush.msra.mxu0 %v189
    %217 = vmatpush.msra.mxu0 %v188
    %218 = vmatpush.msra.mxu0 %v187
    %219 = vmatpush.msra.mxu0 %v186
    %220 = vmatpush.msra.mxu0 %v185
    %221 = vmatmul.f32.gmra.mxu0 %v183
    %v222 = vpop.f32.mrf.mxu0
    %v223 = vadd.f32 %v203, %v222
    %224 = vmatmul.f32.gmra.mxu0 %v184
    %v225 = vpop.f32.mrf.mxu0
    %v226 = vadd.f32 %v203, %v225
    %227 = vdwg.mxu0
    %228 = vst [vmem:[%s5] sm:$0xff] %v223
    %229 = vst [vmem:[%s5 + $0x8] sm:$0xff] %v226
    // Predicated region
    $region30: #{_feed_forward_impl.1} parent=1 // pred_check
      _
    $region31: #{_feed_forward_impl.1} parent=1 // pred_check_branch
      %231 = sbr.rel (0) target = $region33
    $region32: #{_feed_forward_impl.1} parent=1 // pred_region
      _
    $region33: #{_feed_forward_impl.1} parent=1 // pred_fallthru
      _
    // Predicated region
    $region34: #{_feed_forward_impl.1} parent=1 // pred_check
      _
    $region35: #{_feed_forward_impl.1} parent=1 // pred_check_branch
      %233 = sbr.rel (0) target = $region37
    $region36: #{_feed_forward_impl.1} parent=1 // pred_region
      _
    $region37: #{_feed_forward_impl.1} parent=1 // pred_fallthru
      _
    %234 = vsyncpa [#allocation3], 1
    %235 = vsyncpa [#allocation5], 1

</llo_original>
